<compile_context>
chip_gen: v5e
topology: v5e:2x2
jax: 0.10.0
libtpu: 0.0.40
codegen_flags: <defaults>
</compile_context>

<pallas_src>
import functools

import jax
import jax.numpy as jnp
from jax.experimental import pallas as pl
from jax.experimental.pallas import tpu as pltpu


def _round_up(x, m):
    return ((x + m - 1) // m) * m


def _pick_tile(dim, candidates):
    for c in candidates:
        if dim % c == 0:
            return c
    return candidates[-1]


def _decode_kernel(z_ref, tb_ref, w3z_ref, w4_ref, b4_ref, *rest):
    """One (feature-tile, batch-tile) step: out = (ReLU(z@W3z + tb) @ W4 + b4)[*mask]."""
    if len(rest) == 2:
        mask_ref, out_ref = rest
    else:
        mask_ref = None
        (out_ref,) = rest

    # fc3 + ReLU.  Recomputed every step: with tiny latent/hidden dims its MAC
    # count is negligible vs fc4, and dropping the carried scratch keeps both
    # grid axes independent ("parallel", megacore-friendly on v7x).
    h = jnp.dot(z_ref[...], w3z_ref[...], preferred_element_type=jnp.float32)
    h = jnp.maximum(h + tb_ref[...], 0.0)                       # [TB, H]

    recon = jnp.dot(h, w4_ref[...], preferred_element_type=jnp.float32)
    recon = recon + b4_ref[...]                                 # [TB, TN]
    if mask_ref is not None:
        recon = recon * mask_ref[...].astype(jnp.float32)
    out_ref[...] = recon.astype(out_ref.dtype)


def _pallas_decode(z, type_bias, w3z, w4p, b4p, mask, n_feats, out_dtype,
                   resident_bias):
    """recon = (ReLU(z @ w3z + type_bias) @ w4p + b4p) [* mask], tiled on TPU.

    w4p/b4p are pre-padded (once, at construction) so their lane dim is a
    multiple of 128.  `mask` may be None (mask-free variant).  `type_bias` is
    either per-row [B, H] (type path) or resident [1, H] (no_type path).
    """
    B, L = z.shape
    H = w3z.shape[1]
    F_pad = w4p.shape[1]                      # multiple of 128 by construction

    B_pad = _round_up(B, 8)
    TB = _pick_tile(B_pad, (512, 256, 128, 64, 32, 16, 8))
    TN = _pick_tile(F_pad, (1024, 512, 256, 128))

    if B_pad != B:
        z = jnp.pad(z, ((0, B_pad - B), (0, 0)))
        if not resident_bias:
            type_bias = jnp.pad(type_bias, ((0, B_pad - B), (0, 0)))
    if mask is not None and (mask.shape[0] != B_pad or mask.shape[1] != F_pad):
        mask = jnp.pad(mask, ((0, B_pad - mask.shape[0]),
                              (0, F_pad - mask.shape[1])))

    # f outer / b inner: each W4 tile's block index is constant across the
    # inner b steps, so it is DMA'd only F_pad/TN times in total.
    grid = (F_pad // TN, B_pad // TB)

    if resident_bias:
        tb_spec = pl.BlockSpec((1, H), lambda f, b: (0, 0))     # resident
    else:
        tb_spec = pl.BlockSpec((TB, H), lambda f, b: (b, 0))    # per-row

    in_specs = [
        pl.BlockSpec((TB, L), lambda f, b: (b, 0)),    # z tile
        tb_spec,                                       # fused fc3 bias
        pl.BlockSpec((L, H), lambda f, b: (0, 0)),     # W3[:L]   (resident)
        pl.BlockSpec((H, TN), lambda f, b: (0, f)),    # W4 tile  (resident over b)
        pl.BlockSpec((1, TN), lambda f, b: (0, f)),    # b4 tile
    ]
    operands = [z, type_bias, w3z, w4p, b4p]
    if mask is not None:
        in_specs.append(pl.BlockSpec((TB, TN), lambda f, b: (b, f)))
        operands.append(mask)

    out = pl.pallas_call(
        _decode_kernel,
        out_shape=jax.ShapeDtypeStruct((B_pad, F_pad), out_dtype),
        grid_spec=pltpu.PrefetchScalarGridSpec(
            num_scalar_prefetch=0,
            grid=grid,
            in_specs=in_specs,
            out_specs=pl.BlockSpec((TB, TN), lambda f, b: (b, f)),
        ),
        compiler_params=pltpu.CompilerParams(
            dimension_semantics=("parallel", "parallel")),
    )(*operands)

    if B_pad != B or F_pad != n_feats:
        out = out[:B, :n_feats]
    return out


@functools.partial(jax.jit, static_argnames=("no_type", "n_feats", "out_dtype"))
def _forward_impl(params, z, data_type, mask, y, *, no_type, n_feats, out_dtype):
    if no_type:
        # TODO(synk): no_type=True in the torch module sets type_embedding_dim=0
        # (different fc3 fan-in/init); emulated here as a zero type contribution
        # with the T>0 weights, using b3 as a VMEM-resident (1, H) bias.
        type_bias = params["b3"]
        resident_bias = True
    else:
        # Per-type fc3 bias table is precomputed at construction; only the tiny
        # [B, H] gather runs per call.
        type_bias = jnp.take(params["tb_table"], data_type, axis=0)   # [B, H]
        resident_bias = False

    recon_y = _pallas_decode(z, type_bias, params["w3z"], params["w4p"],
                             params["b4p"], mask, n_feats, out_dtype,
                             resident_bias)
    return recon_y, y


class VAEPairModelPallas:
    """JAX/Pallas re-implementation of VAEPairModel's forward (inference path)."""

    def __init__(self, hidden_dim, latent_dim, embedding_dim, n_feats,
                 type_embedding_dim, n_types, key):
        self.hidden_dim = hidden_dim
        self.latent_dim = latent_dim
        self.embedding_dim = embedding_dim
        self.n_feats = n_feats
        self.type_embedding_dim = type_embedding_dim
        self.n_types = n_types

        keys = jax.random.split(key, 5)

        def linear_init(kw, kb, fan_in, fan_out):
            # torch nn.Linear default: U(-1/sqrt(fan_in), 1/sqrt(fan_in))
            bound = 1.0 / float(fan_in) ** 0.5
            w = jax.random.uniform(kw, (fan_in, fan_out), jnp.float32, -bound, bound)
            b = jax.random.uniform(kb, (1, fan_out), jnp.float32, -bound, bound)
            return w, b

        # type embedding (comes from corr_vae_model.type_embedding originally)
        type_embedding = jax.random.normal(
            keys[0], (n_types, type_embedding_dim), jnp.float32)
        # fc3: Linear(latent_dim + type_embedding_dim, hidden_dim)
        w3, b3 = linear_init(keys[1], keys[2],
                             latent_dim + type_embedding_dim, hidden_dim)
        # fc4: Linear(hidden_dim, n_feats)
        w4, b4 = linear_init(keys[3], keys[4], hidden_dim, n_feats)

        # One-time prep (NOT per call): pad fc4 lanes to a multiple of 128 and
        # fold the type embedding into a per-type fc3 bias table.
        F_pad = _round_up(n_feats, 128)
        w4p = jnp.pad(w4, ((0, 0), (0, F_pad - n_feats))) if F_pad != n_feats else w4
        b4p = jnp.pad(b4, ((0, 0), (0, F_pad - n_feats))) if F_pad != n_feats else b4
        tb_table = jnp.dot(type_embedding, w3[latent_dim:, :],
                           preferred_element_type=jnp.float32) + b3   # [n_types, H]

        # Params pytree (passed as a jit argument, NOT baked in as constants).
        # Other layers (merge_hidden, fc2_mu/logvar, gene_embedding, nc_fc1/4,
        # decode_embedding, dropout) are unused on this forward path.
        self.params = {
            "w3z": w3[:latent_dim, :],     # [L, H]
            "b3": b3,                      # [1, H]
            "tb_table": tb_table,          # [n_types, H]
            "w4p": w4p,                    # [H, F_pad]
            "b4p": b4p,                    # [1, F_pad]
        }
        # Raw weights kept only for the pure-JAX reference check below.
        self.ref_params = {"type_embedding": type_embedding,
                           "w3": w3, "b3": b3, "w4": w4, "b4": b4}

    def forward(self, x, y, z, data_type, x_mask, y_mask, ptm_x=None,
                is_train=False, use_mask=False, no_type=False,
                out_dtype=jnp.float32, cast_mask_to_bf16=True):
        # TODO(synk): is_train=True branch uses undefined mu/logvar/return_z in
        # the torch source; only the inference path is implemented.
        mask = None
        if use_mask and y_mask is not None:
            # {0,1} masks are exact in bf16; halves the dominant mask HBM stream
            # of this bandwidth-bound kernel.  Set cast_mask_to_bf16=False for
            # arbitrary-valued masks.
            mask = y_mask.astype(jnp.bfloat16) if cast_mask_to_bf16 else y_mask
        return _forward_impl(self.params, z, data_type, mask, y,
                             no_type=no_type, n_feats=self.n_feats,
                             out_dtype=out_dtype)


def _reference_decode(ref_params, z, emb_type, y_mask=None):
    zt = jnp.concatenate([z, emb_type], axis=-1)
    h = jnp.maximum(zt @ ref_params["w3"] + ref_params["b3"], 0.0)
    recon = h @ ref_params["w4"] + ref_params["b4"]
    return recon if y_mask is None else recon * y_mask


if __name__ == "__main__":
    # Small, deterministic shapes consistent with the module's constructor.
    B = 8
    hidden_dim = 32
    latent_dim = 16
    embedding_dim = 32
    n_feats = 128
    type_embedding_dim = 16
    n_types = 8

    key = jax.random.PRNGKey(0)
    k_model, kx, ky, kz, kt, km = jax.random.split(key, 6)

    model = VAEPairModelPallas(hidden_dim, latent_dim, embedding_dim, n_feats,
                               type_embedding_dim, n_types, k_model)

    x = jax.random.normal(kx, (B, n_feats), jnp.float32)
    y = jax.random.normal(ky, (B, n_feats), jnp.float32)
    z = jax.random.normal(kz, (B, latent_dim), jnp.float32)
    data_type = jax.random.randint(kt, (B,), 0, n_types, jnp.int32)
    x_mask = jnp.ones((B, n_feats), jnp.float32)
    y_mask = (jax.random.uniform(km, (B, n_feats)) > 0.3).astype(jnp.float32)

    emb_type = jnp.take(model.ref_params["type_embedding"], data_type, axis=0)

    # 1) masked inference path
    recon_m, y_out = model.forward(x, y, z, data_type, x_mask, y_mask,
                                   is_train=False, use_mask=True, no_type=False)
    recon_m = jax.block_until_ready(recon_m)
    ref_m = _reference_decode(model.ref_params, z, emb_type, y_mask)
    assert recon_m.shape == (B, n_feats)
    assert jnp.allclose(recon_m, ref_m, atol=1e-5, rtol=1e-5)
    assert jnp.allclose(y_out, y)

    # 2) mask-free variant (no mask stream / no ones materialization)
    recon_u, _ = model.forward(x, y, z, data_type, x_mask, y_mask,
                               is_train=False, use_mask=False, no_type=False)
    recon_u = jax.block_until_ready(recon_u)
    ref_u = _reference_decode(model.ref_params, z, emb_type, None)
    assert jnp.allclose(recon_u, ref_u, atol=1e-5, rtol=1e-5)

    # 3) no_type variant (resident b3 bias; zero type contribution emulation)
    recon_n, _ = model.forward(x, y, z, data_type, x_mask, y_mask,
                               is_train=False, use_mask=True, no_type=True)
    recon_n = jax.block_until_ready(recon_n)
    ref_n = _reference_decode(model.ref_params, z, jnp.zeros_like(emb_type), y_mask)
    assert jnp.allclose(recon_n, ref_n, atol=1e-5, rtol=1e-5)

    print("KERNEL_OK")
</pallas_src>

<mosaic_0001>
module attributes {stable_mosaic.version = 11 : i64} {
  func.func @_decode_kernel(%arg0: i32, %arg1: i32, %arg2: memref<8x16xf32, #tpu.memory_space<vmem>>, %arg3: memref<8x32xf32, #tpu.memory_space<vmem>>, %arg4: memref<16x32xf32, #tpu.memory_space<vmem>>, %arg5: memref<32x128xf32, #tpu.memory_space<vmem>>, %arg6: memref<1x128xf32, #tpu.memory_space<vmem>>, %arg7: memref<8x128xbf16, #tpu.memory_space<vmem>>, %arg8: memref<8x128xf32, #tpu.memory_space<vmem>>) attributes {dimension_semantics = [#tpu.dimension_semantics<parallel>, #tpu.dimension_semantics<parallel>], iteration_bounds = array<i64: 1, 1>, scalar_prefetch = 0 : i64, scratch_operands = 0 : i64, tpu.core_type = #tpu.core_type<tc>, window_params = [{transform_indices = @transform_0, window_bounds = array<i64: 8, 16>}, {transform_indices = @transform_1, window_bounds = array<i64: 8, 32>}, {pipeline_mode = #tpu.pipeline_mode<synchronous>, transform_indices = @transform_2, window_bounds = array<i64: 16, 32>}, {transform_indices = @transform_3, window_bounds = array<i64: 32, 128>}, {transform_indices = @transform_4, window_bounds = array<i64: 1, 128>}, {transform_indices = @transform_5, window_bounds = array<i64: 8, 128>}, {transform_indices = @transform_6, window_bounds = array<i64: 8, 128>}]} {
    %c0 = arith.constant 0 : index
    %c0_0 = arith.constant 0 : index
    %0 = vector.load %arg2[%c0, %c0_0] : memref<8x16xf32, #tpu.memory_space<vmem>>, vector<8x16xf32>
    %c0_1 = arith.constant 0 : index
    %c0_2 = arith.constant 0 : index
    %1 = vector.load %arg4[%c0_1, %c0_2] : memref<16x32xf32, #tpu.memory_space<vmem>>, vector<16x32xf32>
    %cst = arith.constant dense<0.000000e+00> : vector<8x32xf32>
    %2 = tpu.matmul %0, %1, %cst {dimension_numbers = #tpu.dot_dimension_numbers<[1], [0], [0], [1], [0, 0, 1, 1], [], []>} : vector<8x16xf32>, vector<16x32xf32>, vector<8x32xf32> -> vector<8x32xf32>
    %c0_3 = arith.constant 0 : index
    %c0_4 = arith.constant 0 : index
    %3 = vector.load %arg3[%c0_3, %c0_4] : memref<8x32xf32, #tpu.memory_space<vmem>>, vector<8x32xf32>
    %4 = arith.addf %2, %3 : vector<8x32xf32>
    %cst_5 = arith.constant 0.000000e+00 : f32
    %5 = vector.broadcast %cst_5 : f32 to vector<8x32xf32>
    %6 = arith.maximumf %4, %5 : vector<8x32xf32>
    %c0_6 = arith.constant 0 : index
    %c0_7 = arith.constant 0 : index
    %7 = vector.load %arg5[%c0_6, %c0_7] : memref<32x128xf32, #tpu.memory_space<vmem>>, vector<32x128xf32>
    %cst_8 = arith.constant dense<0.000000e+00> : vector<8x128xf32>
    %8 = tpu.matmul %6, %7, %cst_8 {dimension_numbers = #tpu.dot_dimension_numbers<[1], [0], [0], [1], [0, 0, 1, 1], [], []>} : vector<8x32xf32>, vector<32x128xf32>, vector<8x128xf32> -> vector<8x128xf32>
    %c0_9 = arith.constant 0 : index
    %c0_10 = arith.constant 0 : index
    %9 = vector.load %arg6[%c0_9, %c0_10] : memref<1x128xf32, #tpu.memory_space<vmem>>, vector<1x128xf32>
    %10 = vector.broadcast %9 : vector<1x128xf32> to vector<8x128xf32>
    %11 = arith.addf %8, %10 : vector<8x128xf32>
    %c0_11 = arith.constant 0 : index
    %c0_12 = arith.constant 0 : index
    %12 = vector.load %arg7[%c0_11, %c0_12] : memref<8x128xbf16, #tpu.memory_space<vmem>>, vector<8x128xbf16>
    %13 = arith.extf %12 : vector<8x128xbf16> to vector<8x128xf32>
    %14 = arith.mulf %11, %13 : vector<8x128xf32>
    %c0_13 = arith.constant 0 : index
    %c0_14 = arith.constant 0 : index
    %15 = vector.load %arg8[%c0_13, %c0_14] : memref<8x128xf32, #tpu.memory_space<vmem>>, vector<8x128xf32>
    tpu.vector_store %arg8[%c0_13, %c0_14], %14 {strides = array<i32>} : memref<8x128xf32, #tpu.memory_space<vmem>>, vector<8x128xf32>,
    return
  }
  func.func @transform_0(%arg0: i32, %arg1: i32) -> (i32, i32) {
    %c0_i32 = arith.constant 0 : i32
    %c0_i32_0 = arith.constant 0 : i32
    return %arg1, %c0_i32 : i32, i32
  }
  func.func @transform_1(%arg0: i32, %arg1: i32) -> (i32, i32) {
    %c0_i32 = arith.constant 0 : i32
    %c0_i32_0 = arith.constant 0 : i32
    return %arg1, %c0_i32 : i32, i32
  }
  func.func @transform_2(%arg0: i32, %arg1: i32) -> (i32, i32) {
    %c0_i32 = arith.constant 0 : i32
    %c0_i32_0 = arith.constant 0 : i32
    %c0_i32_1 = arith.constant 0 : i32
    return %c0_i32, %c0_i32_0 : i32, i32
  }
  func.func @transform_3(%arg0: i32, %arg1: i32) -> (i32, i32) {
    %c0_i32 = arith.constant 0 : i32
    %c0_i32_0 = arith.constant 0 : i32
    return %c0_i32, %arg0 : i32, i32
  }
  func.func @transform_4(%arg0: i32, %arg1: i32) -> (i32, i32) {
    %c0_i32 = arith.constant 0 : i32
    %c0_i32_0 = arith.constant 0 : i32
    return %c0_i32, %arg0 : i32, i32
  }
  func.func @transform_5(%arg0: i32, %arg1: i32) -> (i32, i32) {
    %c0_i32 = arith.constant 0 : i32
    return %arg1, %arg0 : i32, i32
  }
  func.func @transform_6(%arg0: i32, %arg1: i32) -> (i32, i32) {
    %c0_i32 = arith.constant 0 : i32
    return %arg1, %arg0 : i32, i32
  }
}

</mosaic_0001>

<llo_original>
// kernel: _forward_impl.1
$region0: #{_forward_impl.1}
  #allocation0 [shape = 'u32[]', space=smem, size = 0x4, offset = 0x4, fixed_abs, tag = 'smem constant byte address 0x4 - core index']
  #allocation1 [shape = 'u32[72,128]{1,0:T(1,128)}', space=vmem, size = 0x9000, scoped, tag = 'internal scratch']
  %s0 = inlined_call_operand.vmem [shape: f32[8,16], index: 0, kind: input, shape index: {}]
  %s1 = inlined_call_operand.vmem [shape: f32[8,32], index: 1, kind: input, shape index: {}]
  %s2 = inlined_call_operand.vmem [shape: f32[16,32], index: 2, kind: input, shape index: {}]
  %s3 = inlined_call_operand.vmem [shape: f32[32,128], index: 3, kind: input, shape index: {}]
  %s4 = inlined_call_operand.vmem [shape: f32[1,128], index: 4, kind: input, shape index: {}]
  %s5 = inlined_call_operand.vmem [shape: bf16[8,128], index: 5, kind: input, shape index: {}]
  %s6 = inlined_call_operand.hbm [shape: f32[8,128], index: 6, kind: output, shape index: {}]
  %s7 = sld [smem:[#allocation0]]
  $region34: #{_forward_impl.1} parent=0
    _
  %s9 = ssub.s32 1, %s7
  %s10 = scalar_select 0, %s9, %s7
  $region1: #{_forward_impl.1} parent=0
    #allocation2 [shape = 'u8[4096]{0}', space=vmem, size = 0x1000, scoped, tag = 'output window, operand 0, single buffered']
    #allocation3 [shape = 's32[1]{0}', space=sflag, size = 0x4, scoped, tag = 'scoped memory for _forward_impl.1']
    %11 = vsyncpa [#allocation3], 0
    // Predicated region
    $region2: #{_forward_impl.1} parent=1 // pred_check
      _
    $region3: #{_forward_impl.1} parent=1 // pred_check_branch
      %13 = sbr.rel (0) target = $region5
    $region4: #{_forward_impl.1} parent=1 // pred_region
      _
    $region5: #{_forward_impl.1} parent=1 // pred_fallthru
      _
    // Predicated region
    $region6: #{_forward_impl.1} parent=1 // pred_check
      _
    $region7: #{_forward_impl.1} parent=1 // pred_check_branch
      %15 = sbr.rel (0) target = $region9
    $region8: #{_forward_impl.1} parent=1 // pred_region
      _
    $region9: #{_forward_impl.1} parent=1 // pred_fallthru
      _
    // Predicated region
    $region10: #{_forward_impl.1} parent=1 // pred_check
      _
    $region11: #{_forward_impl.1} parent=1 // pred_check_branch
      %17 = sbr.rel (0) target = $region13
    $region12: #{_forward_impl.1} parent=1 // pred_region
      _
    $region13: #{_forward_impl.1} parent=1 // pred_fallthru
      _
    // Predicated region
    $region14: #{_forward_impl.1} parent=1 // pred_check
      _
    $region15: #{_forward_impl.1} parent=1 // pred_check_branch
      %19 = sbr.rel (0) target = $region17
    $region16: #{_forward_impl.1} parent=1 // pred_region
      _
    $region17: #{_forward_impl.1} parent=1 // pred_fallthru
      _
    // Predicated region
    $region18: #{_forward_impl.1} parent=1 // pred_check
      _
    $region19: #{_forward_impl.1} parent=1 // pred_check_branch
      %21 = sbr.rel (0) target = $region21
    $region20: #{_forward_impl.1} parent=1 // pred_region
      _
    $region21: #{_forward_impl.1} parent=1 // pred_fallthru
      _
    // Predicated region
    $region22: #{_forward_impl.1} parent=1 // pred_check
      _
    $region23: #{_forward_impl.1} parent=1 // pred_check_branch
      %23 = sbr.rel (0) target = $region25
    $region24: #{_forward_impl.1} parent=1 // pred_region
      _
    $region25: #{_forward_impl.1} parent=1 // pred_fallthru
      _
    %v24 = vld [vmem:[%s0] sm:$0xff]
    %v25 = vld [vmem:[%s2] sm:$0xff]
    %v26 = vld [vmem:[%s2 + $0x8] sm:$0xff]
    %v27 = vld [vmem:[%s1] sm:$0xff]
    %vm28 = vcmask 130048
    %v30 = vsel %vm28, %v24, 0
    %32 = vmatpush.msra.mxu0 0.0
    %33 = vmatpush.msra.mxu0 0.0
    %34 = vmatpush.msra.mxu0 0.0
    %35 = vmatpush.msra.mxu0 0.0
    %36 = vmatpush.msra.mxu0 0.0
    %37 = vmatpush.msra.mxu0 0.0
    %38 = vmatpush.msra.mxu0 0.0
    %39 = vmatpush.msra.mxu0 0.0
    %40 = vmatpush.msra.mxu0 0.0
    %41 = vmatpush.msra.mxu0 0.0
    %42 = vmatpush.msra.mxu0 0.0
    %43 = vmatpush.msra.mxu0 0.0
    %44 = vmatpush.msra.mxu0 0.0
    %45 = vmatpush.msra.mxu0 0.0
    %46 = vmatpush.msra.mxu0 %v26
    %47 = vmatpush.msra.mxu0 %v25
    %48 = vmatmul.f32.gmra.mxu0 %v30
    %v49 = vpop.f32.mrf.mxu0
    %v50 = vadd.f32 %v27, %v49
    %51 = vdwg.mxu0
    %v52 = vmax.f32 %v50, 0.0
    %v53 = vld [vmem:[%s3] sm:$0xff]
    %v54 = vld [vmem:[%s3 + $0x8] sm:$0xff]
    %v55 = vld [vmem:[%s3 + $0x10] sm:$0xff]
    %v56 = vld [vmem:[%s3 + $0x18] sm:$0xff]
    %v57 = vld [vmem:[%s4] sm:$0x1]
    %v59 = vperm.slane %v57, 0
    %vm61 = vcmask 261120
    %v63 = vsel %vm61, %v52, 0
    %65 = vmatpush.msra.mxu0 0.0
    %66 = vmatpush.msra.mxu0 0.0
    %67 = vmatpush.msra.mxu0 0.0
    %68 = vmatpush.msra.mxu0 0.0
    %69 = vmatpush.msra.mxu0 0.0
    %70 = vmatpush.msra.mxu0 0.0
    %71 = vmatpush.msra.mxu0 0.0
    %72 = vmatpush.msra.mxu0 0.0
    %73 = vmatpush.msra.mxu0 0.0
    %74 = vmatpush.msra.mxu0 0.0
    %75 = vmatpush.msra.mxu0 0.0
    %76 = vmatpush.msra.mxu0 0.0
    %77 = vmatpush.msra.mxu0 %v56
    %78 = vmatpush.msra.mxu0 %v55
    %79 = vmatpush.msra.mxu0 %v54
    %80 = vmatpush.msra.mxu0 %v53
    %81 = vmatmul.f32.gmra.mxu0 %v63
    %v82 = vpop.f32.mrf.mxu0
    %v83 = vadd.f32 %v59, %v82
    %84 = vdwg.mxu0
    %v85 = vld [vmem:[%s5] sm:$0xf]
    %v86 = vunpack.c.l.bf16 %v85
    %v87 = vmul.f32 %v83, %v86
    %88 = vst [vmem:[#allocation2] sm:$0xff] %v87
    // Predicated region
    $region26: #{_forward_impl.1} parent=1 // pred_check
      _
    $region27: #{_forward_impl.1} parent=1 // pred_check_branch
      %90 = sbr.rel (0) target = $region29
    $region28: #{_forward_impl.1} parent=1 // pred_region
      %92 = vsyncadd [#allocation3], 0
      %s94 = sshll.u32 [#allocation2], 4
      %s95 = int_to_ptr.vmem [resolvable:$true] %s94
      %s96 = sshll.u32 %s6, 4
      %s97 = int_to_ptr.hbm [resolvable:$true] %s96
      %99 = dma.vmem_to_hbm [thread:$0]  %s95, 128, %s97, [#allocation3]
    $region29: #{_forward_impl.1} parent=1 // pred_fallthru
      _
    // Predicated region
    $region30: #{_forward_impl.1} parent=1 // pred_check
      _
    $region31: #{_forward_impl.1} parent=1 // pred_check_branch
      %101 = sbr.rel (0) target = $region33
    $region32: #{_forward_impl.1} parent=1 // pred_region
      %103 = dma.done [#allocation3], 128
    $region33: #{_forward_impl.1} parent=1 // pred_fallthru
      _
    %104 = vsyncpa [#allocation3], 1

</llo_original>
